<compile_context>
chip_gen: v6e
topology: v6e:2x2x1
jax: 0.10.0
libtpu: 0.0.40
codegen_flags: <defaults>
</compile_context>

<pallas_src>
import functools

import jax
import jax.numpy as jnp
from jax.experimental import pallas as pl
from jax.experimental.pallas import tpu as pltpu

EPS = 1e-5


def _conv_relu_kernel(x_ref, w_ref, b_ref, y_ref, sum_ref, sq_ref, *, Bn, H, KF, LCO):
    # x_ref   : (Bn, H, KF)  bf16  fused (3 dy-shifted, 128-padded) padded rows
    # w_ref   : (KF, LCO)    bf16  fused block-banded conv weights (resident)
    # b_ref   : (1, LCO)     f32   conv bias tiled W times along the lane axis (resident)
    # y_ref   : (Bn, H, LCO) f32   post-ReLU activation stash (consumed by kernel B)
    # sum_ref : (1, LCO)     f32   per-block per-lane sum of y
    # sq_ref  : (1, LCO)     f32   per-block per-lane sum of y*y
    lhs = x_ref[...].reshape(Bn * H, KF)                       # contiguous sublane merge
    acc = jnp.dot(lhs, w_ref[...], preferred_element_type=jnp.float32)
    y = jnp.maximum(acc + b_ref[...], 0.0)                     # (Bn*H, LCO) f32
    y_ref[...] = y.reshape(Bn, H, LCO)
    sum_ref[...] = jnp.sum(y, axis=0, keepdims=True)
    sq_ref[...] = jnp.sum(y * y, axis=0, keepdims=True)


def _bn_pool_kernel(y_ref, scale_ref, shift_ref, out_ref, *, Bn, H, W, CO):
    # y_ref     : (Bn, H, LCO)     f32  post-ReLU activation
    # scale_ref : (1, LCO)         f32  gamma * rsqrt(var + eps), tiled (resident)
    # shift_ref : (1, LCO)         f32  beta - mean * scale, tiled (resident)
    # out_ref   : (Bn, H//4, LCO)  f32  pooled output, lane-dense rows
    LCO = W * CO
    y = y_ref[...].reshape(Bn * H, LCO)
    ybn = y * scale_ref[...] + shift_ref[...]                    # BN folded into one FMA
    # 2x2 max-pool on register-resident values (H pairs never cross images: H is even)
    r = jnp.max(ybn.reshape(Bn * H // 2, 2, LCO), axis=1)        # pool along H
    r = jnp.max(r.reshape(Bn * H // 2, W // 2, 2, CO), axis=2)   # pool along W
    out_ref[...] = r.reshape(Bn, H // 4, LCO)


def _largest_block(n, h, target_rows=256):
    """Largest divisor of n with block*h <= target_rows (fill the MXU M dim)."""
    bn = 1
    for cand in range(1, n + 1):
        if n % cand == 0 and cand * h <= target_rows:
            bn = cand
    return bn


def conv_block(x_nchw, w_oihw, bias, gamma, beta):
    """Forward pass of ConvBlock. Input/output are NCHW (PyTorch convention)."""
    N, CI, H, W = x_nchw.shape
    CO = w_oihw.shape[0]
    assert H % 4 == 0 and W % 2 == 0, "kernel assumes H % 4 == 0 and W % 2 == 0"
    LCO = W * CO                                  # lane width of conv-output rows
    K0 = (W + 2) * CI                             # contraction size of one dy band
    KF = ((3 * K0 + 127) // 128) * 128            # fused, 128-padded contraction size
    Bn = _largest_block(N, H)                     # images per grid step (M = Bn*H rows)
    G = N // Bn

    # ---- layout glue (plain JAX, outside the kernels) ----
    # padded input, NHWC with W and CI flattened onto the lane axis
    x_nhwc = jnp.transpose(x_nchw, (0, 2, 3, 1)).astype(jnp.float32)
    xpad = jnp.pad(x_nhwc, ((0, 0), (1, 1), (1, 1), (0, 0)))
    xrows = xpad.reshape(N, H + 2, K0)
    # three row-shifted dy views concatenated on the lane axis, zero-padded to KF lanes,
    # staged as bf16 (MXU input precision) -> a single matmul per grid step
    x_fused = jnp.concatenate([xrows[:, dy:dy + H, :] for dy in range(3)], axis=-1)
    x_fused = jnp.pad(x_fused, ((0, 0), (0, 0), (0, KF - 3 * K0))).astype(jnp.bfloat16)

    # fused block-banded weights: W_f[dy*K0 + (w+dx)*CI + ci, w*CO + co] = W[co,ci,dy,dx]
    wt = jnp.transpose(w_oihw, (2, 3, 1, 0)).astype(jnp.float32)   # (dy, dx, ci, co)
    shift_mats = jnp.zeros((3, W + 2, W), jnp.float32)
    for dx in range(3):
        shift_mats = shift_mats.at[dx, dx:dx + W, :].set(jnp.eye(W, dtype=jnp.float32))
    w_band = jnp.einsum("xiw,dxab->diawb", shift_mats, wt).reshape(3 * K0, LCO)
    w_fused = jnp.pad(w_band, ((0, KF - 3 * K0), (0, 0))).astype(jnp.bfloat16)

    # conv bias tiled W times along the lane axis
    b_l = jnp.tile(bias.reshape(1, CO).astype(jnp.float32), (1, W))

    # ---- kernel A: conv + ReLU, activation stash + per-block channel stats ----
    kernel_a = functools.partial(_conv_relu_kernel, Bn=Bn, H=H, KF=KF, LCO=LCO)
    y_act, blk_sum, blk_sq = pl.pallas_call(
        kernel_a,
        out_shape=(jax.ShapeDtypeStruct((N, H, LCO), jnp.float32),
                   jax.ShapeDtypeStruct((G, 1, LCO), jnp.float32),
                   jax.ShapeDtypeStruct((G, 1, LCO), jnp.float32)),
        grid=(G,),
        in_specs=[
            pl.BlockSpec((Bn, H, KF), lambda g: (g, 0, 0)),     # per-block fused rows
            pl.BlockSpec((KF, LCO), lambda g: (0, 0)),          # resident fused weights
            pl.BlockSpec((1, LCO), lambda g: (0, 0)),           # resident bias
        ],
        out_specs=(
            pl.BlockSpec((Bn, H, LCO), lambda g: (g, 0, 0)),    # activation stash
            pl.BlockSpec((None, 1, LCO), lambda g: (g, 0, 0)),  # per-block sums
            pl.BlockSpec((None, 1, LCO), lambda g: (g, 0, 0)),  # per-block sums of sq
        ),
        compiler_params=pltpu.CompilerParams(
            dimension_semantics=("parallel",)),                 # shardable across TCs
    )(x_fused, w_fused, b_l)

    # ---- global BN statistics + scale/shift (tiny, plain JAX, train-mode BN) ----
    cnt = float(N * H * W)
    s_co = blk_sum.sum(axis=(0, 1)).reshape(W, CO).sum(axis=0)   # per-channel sum
    q_co = blk_sq.sum(axis=(0, 1)).reshape(W, CO).sum(axis=0)    # per-channel sum of sq
    mean = s_co / cnt
    var = q_co / cnt - mean * mean                               # biased var (train BN)
    # TODO(synk): E[y^2] - mean^2 in f32 can lose precision at much larger N*H*W;
    # switch to a shifted / two-pass reduction if scaling up.
    scale = gamma.astype(jnp.float32) * jax.lax.rsqrt(var + EPS)
    shift = beta.astype(jnp.float32) - mean * scale
    scale_l = jnp.tile(scale.reshape(1, CO), (1, W))             # (1, LCO), lane order
    shift_l = jnp.tile(shift.reshape(1, CO), (1, W))

    # ---- kernel B: BN FMA + 2x2 max-pool, lane-dense output ----
    out_rows = (H // 2) * (W // 2) * CO // LCO                   # == H // 4
    kernel_b = functools.partial(_bn_pool_kernel, Bn=Bn, H=H, W=W, CO=CO)
    out_flat = pl.pallas_call(
        kernel_b,
        out_shape=jax.ShapeDtypeStruct((N, out_rows, LCO), jnp.float32),
        grid=(G,),
        in_specs=[
            pl.BlockSpec((Bn, H, LCO), lambda g: (g, 0, 0)),     # activation block
            pl.BlockSpec((1, LCO), lambda g: (0, 0)),            # resident scale
            pl.BlockSpec((1, LCO), lambda g: (0, 0)),            # resident shift
        ],
        out_specs=pl.BlockSpec((Bn, out_rows, LCO), lambda g: (g, 0, 0)),
        compiler_params=pltpu.CompilerParams(
            dimension_semantics=("parallel",)),
    )(y_act, scale_l, shift_l)

    # lane-dense (N, H//4, W*CO) -> (N, H/2, W/2, CO) -> NCHW
    out = out_flat.reshape(N, H // 2, W // 2, CO)
    return jnp.transpose(out, (0, 3, 1, 2))


def conv_block_reference(x_nchw, w_oihw, bias, gamma, beta):
    """Pure-JAX reference mirroring the PyTorch forward (train-mode BN)."""
    conv = jax.lax.conv_general_dilated(
        x_nchw, w_oihw, window_strides=(1, 1), padding="SAME",
        dimension_numbers=("NCHW", "OIHW", "NCHW"),
        precision=jax.lax.Precision.HIGHEST)
    conv = conv + bias[None, :, None, None]
    y = jnp.maximum(conv, 0.0)
    mean = jnp.mean(y, axis=(0, 2, 3), keepdims=True)
    var = jnp.mean(jnp.square(y - mean), axis=(0, 2, 3), keepdims=True)
    ybn = (y - mean) * jax.lax.rsqrt(var + EPS)
    ybn = ybn * gamma[None, :, None, None] + beta[None, :, None, None]
    n, c, h, w = ybn.shape
    pooled = jnp.max(ybn.reshape(n, c, h // 2, 2, w // 2, 2), axis=(3, 5))
    return pooled


if __name__ == "__main__":
    # ConvBlock(ni=4, no=8), input x: (N=2, C=4, H=16, W=16) NCHW
    N, CI, CO, H, W = 2, 4, 8, 16, 16
    key = jax.random.PRNGKey(0)
    kx, kw, kb, kg, kbe = jax.random.split(key, 5)

    x = jax.random.normal(kx, (N, CI, H, W), dtype=jnp.float32)
    conv_w = jax.random.normal(kw, (CO, CI, 3, 3), dtype=jnp.float32) * 0.1
    conv_b = jax.random.normal(kb, (CO,), dtype=jnp.float32) * 0.1
    bn_gamma = 1.0 + 0.1 * jax.random.normal(kg, (CO,), dtype=jnp.float32)
    bn_beta = 0.1 * jax.random.normal(kbe, (CO,), dtype=jnp.float32)
    # TODO(synk): BatchNorm running_mean/running_var momentum updates are a training
    # side effect (do not affect the returned value) and are not modeled here.

    out = jax.block_until_ready(conv_block(x, conv_w, conv_b, bn_gamma, bn_beta))
    ref = jax.block_until_ready(
        conv_block_reference(x, conv_w, conv_b, bn_gamma, bn_beta))

    assert out.shape == (N, CO, H // 2, W // 2), out.shape
    assert jnp.all(jnp.isfinite(out))
    # bf16 MXU inputs (f32 accumulation) vs. an all-f32 reference -> slightly wider tol.
    assert jnp.allclose(out, ref, atol=3e-2, rtol=3e-2), float(
        jnp.max(jnp.abs(out - ref)))

    print("KERNEL_OK")
</pallas_src>

<mosaic_0001>
module attributes {stable_mosaic.version = 11 : i64} {
  func.func @_conv_relu_kernel(%arg0: i32, %arg1: memref<2x16x256xbf16, #tpu.memory_space<vmem>>, %arg2: memref<256x128xbf16, #tpu.memory_space<vmem>>, %arg3: memref<1x128xf32, #tpu.memory_space<vmem>>, %arg4: memref<2x16x128xf32, #tpu.memory_space<vmem>>, %arg5: memref<1x1x128xf32, #tpu.memory_space<vmem>>, %arg6: memref<1x1x128xf32, #tpu.memory_space<vmem>>) attributes {dimension_semantics = [#tpu.dimension_semantics<parallel>], iteration_bounds = array<i64: 1>, scalar_prefetch = 0 : i64, scratch_operands = 0 : i64, tpu.core_type = #tpu.core_type<tc>, window_params = [{transform_indices = @transform_0, window_bounds = array<i64: 2, 16, 256>}, {pipeline_mode = #tpu.pipeline_mode<synchronous>, transform_indices = @transform_1, window_bounds = array<i64: 256, 128>}, {pipeline_mode = #tpu.pipeline_mode<synchronous>, transform_indices = @transform_2, window_bounds = array<i64: 1, 128>}, {transform_indices = @transform_3, window_bounds = array<i64: 2, 16, 128>}, {transform_indices = @transform_4, window_bounds = array<i64: 1, 1, 128>}, {transform_indices = @transform_5, window_bounds = array<i64: 1, 1, 128>}]} {
    %c0 = arith.constant 0 : index
    %c0_0 = arith.constant 0 : index
    %c0_1 = arith.constant 0 : index
    %0 = vector.load %arg1[%c0, %c0_0, %c0_1] : memref<2x16x256xbf16, #tpu.memory_space<vmem>>, vector<2x16x256xbf16>
    %1 = vector.shape_cast %0 : vector<2x16x256xbf16> to vector<32x256xbf16>
    %c0_2 = arith.constant 0 : index
    %c0_3 = arith.constant 0 : index
    %2 = vector.load %arg2[%c0_2, %c0_3] : memref<256x128xbf16, #tpu.memory_space<vmem>>, vector<256x128xbf16>
    %cst = arith.constant dense<0.000000e+00> : vector<32x128xf32>
    %3 = tpu.matmul %1, %2, %cst {dimension_numbers = #tpu.dot_dimension_numbers<[1], [0], [0], [1], [0, 0, 1, 1], [], []>} : vector<32x256xbf16>, vector<256x128xbf16>, vector<32x128xf32> -> vector<32x128xf32>
    %c0_4 = arith.constant 0 : index
    %c0_5 = arith.constant 0 : index
    %4 = vector.load %arg3[%c0_4, %c0_5] : memref<1x128xf32, #tpu.memory_space<vmem>>, vector<1x128xf32>
    %5 = vector.broadcast %4 : vector<1x128xf32> to vector<32x128xf32>
    %6 = arith.addf %3, %5 : vector<32x128xf32>
    %cst_6 = arith.constant 0.000000e+00 : f32
    %7 = vector.broadcast %cst_6 : f32 to vector<32x128xf32>
    %8 = arith.maximumf %6, %7 : vector<32x128xf32>
    %9 = vector.shape_cast %8 : vector<32x128xf32> to vector<2x16x128xf32>
    %c0_7 = arith.constant 0 : index
    %c0_8 = arith.constant 0 : index
    %c0_9 = arith.constant 0 : index
    %10 = vector.load %arg4[%c0_7, %c0_8, %c0_9] : memref<2x16x128xf32, #tpu.memory_space<vmem>>, vector<2x16x128xf32>
    tpu.vector_store %arg4[%c0_7, %c0_8, %c0_9], %9 {strides = array<i32>} : memref<2x16x128xf32, #tpu.memory_space<vmem>>, vector<2x16x128xf32>,
    %cst_10 = arith.constant dense<0.000000e+00> : vector<128xf32>
    %11 = vector.multi_reduction <add>, %8, %cst_10 [0] : vector<32x128xf32> to vector<128xf32>
    %12 = vector.shape_cast %11 : vector<128xf32> to vector<1x128xf32>
    %c0_11 = arith.constant 0 : index
    %c0_12 = arith.constant 0 : index
    %c0_13 = arith.constant 0 : index
    %13 = vector.load %arg5[%c0_11, %c0_12, %c0_13] : memref<1x1x128xf32, #tpu.memory_space<vmem>>, vector<1x1x128xf32>
    %14 = vector.shape_cast %13 : vector<1x1x128xf32> to vector<1x128xf32>
    %15 = vector.shape_cast %12 : vector<1x128xf32> to vector<1x1x128xf32>
    tpu.vector_store %arg5[%c0_11, %c0_12, %c0_13], %15 {strides = array<i32>} : memref<1x1x128xf32, #tpu.memory_space<vmem>>, vector<1x1x128xf32>,
    %16 = arith.mulf %8, %8 : vector<32x128xf32>
    %cst_14 = arith.constant dense<0.000000e+00> : vector<128xf32>
    %17 = vector.multi_reduction <add>, %16, %cst_14 [0] : vector<32x128xf32> to vector<128xf32>
    %18 = vector.shape_cast %17 : vector<128xf32> to vector<1x128xf32>
    %c0_15 = arith.constant 0 : index
    %c0_16 = arith.constant 0 : index
    %c0_17 = arith.constant 0 : index
    %19 = vector.load %arg6[%c0_15, %c0_16, %c0_17] : memref<1x1x128xf32, #tpu.memory_space<vmem>>, vector<1x1x128xf32>
    %20 = vector.shape_cast %19 : vector<1x1x128xf32> to vector<1x128xf32>
    %21 = vector.shape_cast %18 : vector<1x128xf32> to vector<1x1x128xf32>
    tpu.vector_store %arg6[%c0_15, %c0_16, %c0_17], %21 {strides = array<i32>} : memref<1x1x128xf32, #tpu.memory_space<vmem>>, vector<1x1x128xf32>,
    return
  }
  func.func @transform_0(%arg0: i32) -> (i32, i32, i32) {
    %c0_i32 = arith.constant 0 : i32
    %c0_i32_0 = arith.constant 0 : i32
    %c0_i32_1 = arith.constant 0 : i32
    return %arg0, %c0_i32, %c0_i32_0 : i32, i32, i32
  }
  func.func @transform_1(%arg0: i32) -> (i32, i32) {
    %c0_i32 = arith.constant 0 : i32
    %c0_i32_0 = arith.constant 0 : i32
    %c0_i32_1 = arith.constant 0 : i32
    return %c0_i32, %c0_i32_0 : i32, i32
  }
  func.func @transform_2(%arg0: i32) -> (i32, i32) {
    %c0_i32 = arith.constant 0 : i32
    %c0_i32_0 = arith.constant 0 : i32
    %c0_i32_1 = arith.constant 0 : i32
    return %c0_i32, %c0_i32_0 : i32, i32
  }
  func.func @transform_3(%arg0: i32) -> (i32, i32, i32) {
    %c0_i32 = arith.constant 0 : i32
    %c0_i32_0 = arith.constant 0 : i32
    %c0_i32_1 = arith.constant 0 : i32
    return %arg0, %c0_i32, %c0_i32_0 : i32, i32, i32
  }
  func.func @transform_4(%arg0: i32) -> (i32, i32, i32) {
    %c0_i32 = arith.constant 0 : i32
    %c0_i32_0 = arith.constant 0 : i32
    %c0_i32_1 = arith.constant 0 : i32
    return %arg0, %c0_i32, %c0_i32_0 : i32, i32, i32
  }
  func.func @transform_5(%arg0: i32) -> (i32, i32, i32) {
    %c0_i32 = arith.constant 0 : i32
    %c0_i32_0 = arith.constant 0 : i32
    %c0_i32_1 = arith.constant 0 : i32
    return %arg0, %c0_i32, %c0_i32_0 : i32, i32, i32
  }
}

</mosaic_0001>

<llo_original>
// kernel: tpu_custom_call.1
$region0: #{tpu_custom_call.1}
  #allocation0 [shape = 'u32[]', space=smem, size = 0x4, offset = 0x4, fixed_abs, tag = 'smem constant byte address 0x4 - core index']
  #allocation1 [shape = 'u32[144,128]{1,0:T(1,128)}', space=vmem, size = 0x12000, scoped, tag = 'internal scratch']
  %s0 = inlined_call_operand.hbm [shape: bf16[2,16,256], index: 0, kind: input, shape index: {}]
  %s1 = inlined_call_operand.hbm [shape: bf16[256,128], index: 1, kind: input, shape index: {}]
  %s2 = inlined_call_operand.vmem [shape: f32[1,128], index: 2, kind: input, shape index: {}]
  %s3 = inlined_call_operand.hbm [shape: f32[2,16,128], index: 3, kind: output, shape index: {0}]
  %s4 = inlined_call_operand.hbm [shape: f32[1,1,128], index: 4, kind: output, shape index: {1}]
  %s5 = inlined_call_operand.hbm [shape: f32[1,1,128], index: 5, kind: output, shape index: {2}]
  %6 = xla_tuple %s3, %s4, %s5
  %s7 = sld [smem:[#allocation0]]
  $region46: #{tpu_custom_call.1} parent=0
    _
  %s9 = ssub.s32 1, %s7
  %s10 = scalar_select 0, %s9, %s7
  $region1: #{tpu_custom_call.1} parent=0
    #allocation2 [shape = 'u8[16384]{0}', space=vmem, size = 0x4000, scoped, tag = 'input window, operand 0, single buffered']
    #allocation3 [shape = 's32[1]{0}', space=sflag, size = 0x4, scoped, tag = 'scoped memory for tpu_custom_call.1']
    #allocation4 [shape = 's32[1]{0}', space=sflag, size = 0x4, scoped, tag = 'scoped memory for tpu_custom_call.1']
    #allocation5 [shape = 'u8[65536]{0}', space=vmem, size = 0x10000, scoped, tag = 'input window, operand 1, single buffered']
    #allocation6 [shape = 's32[1]{0}', space=sflag, size = 0x4, scoped, tag = 'scoped memory for tpu_custom_call.1']
    #allocation7 [shape = 'u8[16384]{0}', space=vmem, size = 0x4000, scoped, tag = 'output window, operand 0, single buffered']
    #allocation8 [shape = 'u8[512]{0}', space=vmem, size = 0x400, scoped, tag = 'output window, operand 1, single buffered']
    #allocation9 [shape = 's32[1]{0}', space=sflag, size = 0x4, scoped, tag = 'scoped memory for tpu_custom_call.1']
    #allocation10 [shape = 'u8[512]{0}', space=vmem, size = 0x400, scoped, tag = 'output window, operand 2, single buffered']
    %11 = vsyncpa [#allocation3], 0
    %12 = vsyncpa [#allocation6], 0
    %13 = vsyncpa [#allocation4], 0
    %14 = vsyncpa [#allocation9], 0
    // Predicated region
    $region2: #{tpu_custom_call.1} parent=1 // pred_check
      _
    $region3: #{tpu_custom_call.1} parent=1 // pred_check_branch
      %16 = sbr.rel (0) target = $region5
    $region4: #{tpu_custom_call.1} parent=1 // pred_region
      %s18 = ssub.s32 512, 512
      %19 = vsyncadd [#allocation3], %s18
      %s20 = sshll.u32 [#allocation2], 4
      %s21 = int_to_ptr.vmem [resolvable:$true] %s20
      %26 = dma.hbm_to_vmem [thread:$0]  %s0, 512, %s21, [#allocation3], 128, 128, 8
    $region5: #{tpu_custom_call.1} parent=1 // pred_fallthru
      _
    // Predicated region
    $region6: #{tpu_custom_call.1} parent=1 // pred_check
      _
    $region7: #{tpu_custom_call.1} parent=1 // pred_check_branch
      %28 = sbr.rel (0) target = $region9
    $region8: #{tpu_custom_call.1} parent=1 // pred_region
      %s30 = ssub.s32 2048, 2048
      %31 = vsyncadd [#allocation6], %s30
      %s32 = sshll.u32 [#allocation5], 4
      %s33 = int_to_ptr.vmem [resolvable:$true] %s32
      %38 = dma.hbm_to_vmem [thread:$0]  %s1, 2048, %s33, [#allocation6], 64, 64, 4
    $region9: #{tpu_custom_call.1} parent=1 // pred_fallthru
      _
    // Predicated region
    $region10: #{tpu_custom_call.1} parent=1 // pred_check
      _
    $region11: #{tpu_custom_call.1} parent=1 // pred_check_branch
      %40 = sbr.rel (0) target = $region13
    $region12: #{tpu_custom_call.1} parent=1 // pred_region
      _
    $region13: #{tpu_custom_call.1} parent=1 // pred_fallthru
      _
    // Predicated region
    $region14: #{tpu_custom_call.1} parent=1 // pred_check
      _
    $region15: #{tpu_custom_call.1} parent=1 // pred_check_branch
      %42 = sbr.rel (0) target = $region17
    $region16: #{tpu_custom_call.1} parent=1 // pred_region
      %43 = dma.done [#allocation3], 512
    $region17: #{tpu_custom_call.1} parent=1 // pred_fallthru
      _
    // Predicated region
    $region18: #{tpu_custom_call.1} parent=1 // pred_check
      _
    $region19: #{tpu_custom_call.1} parent=1 // pred_check_branch
      %45 = sbr.rel (0) target = $region21
    $region20: #{tpu_custom_call.1} parent=1 // pred_region
      %46 = dma.done [#allocation6], 2048
    $region21: #{tpu_custom_call.1} parent=1 // pred_fallthru
      _
    %v48 = vld [vmem:[#allocation2] sm:$0xff]
    %v49 = vld [vmem:[#allocation2 + $0x8] sm:$0xff]
    %v50 = vld [vmem:[#allocation2 + $0x10] sm:$0xff]
    %v51 = vld [vmem:[#allocation2 + $0x18] sm:$0xff]
    %v52 = vld [vmem:[#allocation5] sm:$0xf]
    %v53 = vld [vmem:[#allocation5 + $0x4] sm:$0xf]
    %v54 = vld [vmem:[#allocation5 + $0x8] sm:$0xf]
    %v55 = vld [vmem:[#allocation5 + $0xc] sm:$0xf]
    %v56 = vld [vmem:[#allocation5 + $0x10] sm:$0xf]
    %v57 = vld [vmem:[#allocation5 + $0x14] sm:$0xf]
    %v58 = vld [vmem:[#allocation5 + $0x18] sm:$0xf]
    %v59 = vld [vmem:[#allocation5 + $0x1c] sm:$0xf]
    %v60 = vld [vmem:[#allocation5 + $0x20] sm:$0xf]
    %v61 = vld [vmem:[#allocation5 + $0x24] sm:$0xf]
    %v62 = vld [vmem:[#allocation5 + $0x28] sm:$0xf]
    %v63 = vld [vmem:[#allocation5 + $0x2c] sm:$0xf]
    %v64 = vld [vmem:[#allocation5 + $0x30] sm:$0xf]
    %v65 = vld [vmem:[#allocation5 + $0x34] sm:$0xf]
    %v66 = vld [vmem:[#allocation5 + $0x38] sm:$0xf]
    %v67 = vld [vmem:[#allocation5 + $0x3c] sm:$0xf]
    %v68 = vld [vmem:[#allocation5 + $0x40] sm:$0xf]
    %v69 = vld [vmem:[#allocation5 + $0x44] sm:$0xf]
    %v70 = vld [vmem:[#allocation5 + $0x48] sm:$0xf]
    %v71 = vld [vmem:[#allocation5 + $0x4c] sm:$0xf]
    %v72 = vld [vmem:[#allocation5 + $0x50] sm:$0xf]
    %v73 = vld [vmem:[#allocation5 + $0x54] sm:$0xf]
    %v74 = vld [vmem:[#allocation5 + $0x58] sm:$0xf]
    %v75 = vld [vmem:[#allocation5 + $0x5c] sm:$0xf]
    %v76 = vld [vmem:[#allocation5 + $0x60] sm:$0xf]
    %v77 = vld [vmem:[#allocation5 + $0x64] sm:$0xf]
    %v78 = vld [vmem:[#allocation5 + $0x68] sm:$0xf]
    %v79 = vld [vmem:[#allocation5 + $0x6c] sm:$0xf]
    %v80 = vld [vmem:[#allocation5 + $0x70] sm:$0xf]
    %v81 = vld [vmem:[#allocation5 + $0x74] sm:$0xf]
    %v82 = vld [vmem:[#allocation5 + $0x78] sm:$0xf]
    %v83 = vld [vmem:[#allocation5 + $0x7c] sm:$0xf]
    %v84 = vld [vmem:[%s2] sm:$0x1]
    %v86 = vlaneseq
    %v87 = vshrl.u32 %v86, 7
    %v88 = vsub.s32 0, %v87
    %v89 = vrot.slane %v84, %v88
    %v95 = vunpack.c.l.b16 %v48
    %v96 = vunpack.c.h.b16 %v48
    %v97 = vunpack.c.l.b16 %v49
    %v98 = vunpack.c.h.b16 %v49
    %v99 = vunpack.c.l.b16 %v50
    %v100 = vunpack.c.h.b16 %v50
    %v101 = vunpack.c.l.b16 %v51
    %v102 = vunpack.c.h.b16 %v51
    %v103 = vpack.c.b16 %v97, %v95
    %v104 = vpack.c.b16 %v98, %v96
    %v105 = vpack.c.b16 %v101, %v99
    %v106 = vpack.c.b16 %v102, %v100
    %v143 = vunpack.c.l.b16 %v52
    %v144 = vunpack.c.l.b16 %v53
    %v145 = vunpack.c.l.b16 %v54
    %v146 = vunpack.c.l.b16 %v55
    %v147 = vunpack.c.l.b16 %v56
    %v148 = vunpack.c.l.b16 %v57
    %v149 = vunpack.c.l.b16 %v58
    %v150 = vunpack.c.l.b16 %v59
    %v151 = vunpack.c.l.b16 %v60
    %v152 = vunpack.c.l.b16 %v61
    %v153 = vunpack.c.l.b16 %v62
    %v154 = vunpack.c.l.b16 %v63
    %v155 = vunpack.c.l.b16 %v64
    %v156 = vunpack.c.l.b16 %v65
    %v157 = vunpack.c.l.b16 %v66
    %v158 = vunpack.c.l.b16 %v67
    %v159 = vunpack.c.l.b16 %v68
    %v160 = vunpack.c.l.b16 %v69
    %v161 = vunpack.c.l.b16 %v70
    %v162 = vunpack.c.l.b16 %v71
    %v163 = vunpack.c.l.b16 %v72
    %v164 = vunpack.c.l.b16 %v73
    %v165 = vunpack.c.l.b16 %v74
    %v166 = vunpack.c.l.b16 %v75
    %v167 = vunpack.c.l.b16 %v76
    %v168 = vunpack.c.l.b16 %v77
    %v169 = vunpack.c.l.b16 %v78
    %v170 = vunpack.c.l.b16 %v79
    %v171 = vunpack.c.l.b16 %v80
    %v172 = vunpack.c.l.b16 %v81
    %v173 = vunpack.c.l.b16 %v82
    %v174 = vunpack.c.l.b16 %v83
    %v175 = vpack.c.b16 %v144, %v143
    %v176 = vpack.c.b16 %v146, %v145
    %v177 = vpack.c.b16 %v148, %v147
    %v178 = vpack.c.b16 %v150, %v149
    %v179 = vpack.c.b16 %v152, %v151
    %v180 = vpack.c.b16 %v154, %v153
    %v181 = vpack.c.b16 %v156, %v155
    %v182 = vpack.c.b16 %v158, %v157
    %v183 = vpack.c.b16 %v160, %v159
    %v184 = vpack.c.b16 %v162, %v161
    %v185 = vpack.c.b16 %v164, %v163
    %v186 = vpack.c.b16 %v166, %v165
    %v187 = vpack.c.b16 %v168, %v167
    %v188 = vpack.c.b16 %v170, %v169
    %v189 = vpack.c.b16 %v172, %v171
    %v190 = vpack.c.b16 %v174, %v173
    %207 = vmatprep.subr.bf16.mxu0 0
    %208 = vmatpush1.bf16.msra.mxu0 %v182
    %209 = vmatprep.subr.bf16.mxu0 0
    %210 = vmatpush1.bf16.msra.mxu0 %v181
    %211 = vmatprep.subr.bf16.mxu0 0
    %212 = vmatpush1.bf16.msra.mxu0 %v180
    %213 = vmatprep.subr.bf16.mxu0 0
    %214 = vmatpush1.bf16.msra.mxu0 %v179
    %215 = vmatprep.subr.bf16.mxu0 0
    %216 = vmatpush1.bf16.msra.mxu0 %v178
    %217 = vmatprep.subr.bf16.mxu0 0
    %218 = vmatpush1.bf16.msra.mxu0 %v177
    %219 = vmatprep.subr.bf16.mxu0 0
    %220 = vmatpush1.bf16.msra.mxu0 %v176
    %221 = vmatprep.subr.bf16.mxu0 0
    %222 = vmatpush1.bf16.msra.mxu0 %v175
    %223 = vmatprep.subr.bf16.mxu0 0
    %224 = vmatpush2.bf16.msra.mxu0 %v190
    %225 = vmatprep.subr.bf16.mxu0 0
    %226 = vmatpush2.bf16.msra.mxu0 %v189
    %227 = vmatprep.subr.bf16.mxu0 0
    %228 = vmatpush2.bf16.msra.mxu0 %v188
    %229 = vmatprep.subr.bf16.mxu0 0
    %230 = vmatpush2.bf16.msra.mxu0 %v187
    %231 = vmatprep.subr.bf16.mxu0 0
    %232 = vmatpush2.bf16.msra.mxu0 %v186
    %233 = vmatprep.subr.bf16.mxu0 0
    %234 = vmatpush2.bf16.msra.mxu0 %v185
    %235 = vmatprep.subr.bf16.mxu0 0
    %236 = vmatpush2.bf16.msra.mxu0 %v184
    %237 = vmatprep.subr.bf16.mxu0 0
    %238 = vmatpush2.bf16.msra.mxu0 %v183
    %239 = vmatprep.mubr.bf16.mxu0 %v104
    %240 = vmatmul.mubr.bf16.gmra.mxu0 %v103
    %v241 = vpop.f32.mrf.mxu0
    %v242 = vadd.f32 %v89, %v241
    %v243 = vpop.f32.mrf.mxu0
    %v244 = vpop.f32.mrf.mxu0
    %v245 = vadd.f32 %v89, %v244
    %v246 = vpop.f32.mrf.mxu0
    %247 = vmatprep.mubr.bf16.mxu0 %v106
    %248 = vmatmul.mubr.bf16.gmra.mxu0 %v105
    %v249 = vpop.f32.mrf.mxu0
    %v250 = vadd.f32 %v89, %v249
    %v251 = vpop.f32.mrf.mxu0
    %v252 = vpop.f32.mrf.mxu0
    %v253 = vadd.f32 %v89, %v252
    %v254 = vpop.f32.mrf.mxu0
    %255 = vdwg.mxu0
    %v256 = vmax.f32 %v242, 0.0
    %v257 = vmax.f32 %v245, 0.0
    %v258 = vmax.f32 %v250, 0.0
    %v259 = vmax.f32 %v253, 0.0
    %260 = vst [vmem:[#allocation7] sm:$0xff] %v256
    %261 = vst [vmem:[#allocation7 + $0x8] sm:$0xff] %v257
    %262 = vst [vmem:[#allocation7 + $0x10] sm:$0xff] %v258
    %263 = vst [vmem:[#allocation7 + $0x18] sm:$0xff] %v259
    %v264 = vadd.f32 %v256, %v257
    %v265 = vadd.f32 %v264, %v258
    %v266 = vadd.f32 %v265, %v259
    %v267 = vrot.slane %v266, 4
    %v268 = vadd.f32 %v266, %v267
    %v269 = vrot.slane %v268, 2
    %v270 = vadd.f32 %v268, %v269
    %v271 = vrot.slane %v270, 1
    %v272 = vadd.f32 %v270, %v271
    %273 = vst [vmem:[#allocation8] sm:$0x1] %v272
    %v274 = vmul.f32 %v256, %v256
    %v275 = vmul.f32 %v257, %v257
    %v276 = vmul.f32 %v258, %v258
    %v277 = vmul.f32 %v259, %v259
    %v278 = vadd.f32 %v274, %v275
    %v279 = vadd.f32 %v278, %v276
    %v280 = vadd.f32 %v279, %v277
    %v281 = vrot.slane %v280, 4
    %v282 = vadd.f32 %v280, %v281
    %v283 = vrot.slane %v282, 2
    %v284 = vadd.f32 %v282, %v283
    %v285 = vrot.slane %v284, 1
    %v286 = vadd.f32 %v284, %v285
    %287 = vst [vmem:[#allocation10] sm:$0x1] %v286
    // Predicated region
    $region22: #{tpu_custom_call.1} parent=1 // pred_check
      _
    $region23: #{tpu_custom_call.1} parent=1 // pred_check_branch
      %289 = sbr.rel (0) target = $region25
    $region24: #{tpu_custom_call.1} parent=1 // pred_region
      %s291 = ssub.s32 512, 512
      %292 = vsyncadd [#allocation4], %s291
      %s293 = sshll.u32 [#allocation7], 4
      %s294 = int_to_ptr.vmem [resolvable:$true] %s293
      %299 = dma.vmem_to_hbm [thread:$0]  %s294, 512, %s3, [#allocation4], 128, 128, 8
    $region25: #{tpu_custom_call.1} parent=1 // pred_fallthru
      _
    // Predicated region
    $region26: #{tpu_custom_call.1} parent=1 // pred_check
      _
    $region27: #{tpu_custom_call.1} parent=1 // pred_check_branch
      %301 = sbr.rel (0) target = $region29
    $region28: #{tpu_custom_call.1} parent=1 // pred_region
      %s303 = ssub.s32 16, 16
      %304 = vsyncadd [#allocation9], %s303
      %s306 = sshll.u32 [#allocation8], 4
      %s307 = int_to_ptr.vmem [resolvable:$true] %s306
      %309 = dma.vmem_to_hbm [thread:$0]  %s307, 16, %s4, [#allocation9]
    $region29: #{tpu_custom_call.1} parent=1 // pred_fallthru
      _
    // Predicated region
    $region30: #{tpu_custom_call.1} parent=1 // pred_check
      _
    $region31: #{tpu_custom_call.1} parent=1 // pred_check_branch
      %311 = sbr.rel (0) target = $region33
    $region32: #{tpu_custom_call.1} parent=1 // pred_region
      %s313 = ssub.s32 16, 16
      %314 = vsyncadd [#allocation9], %s313
      %s316 = sshll.u32 [#allocation10], 4
      %s317 = int_to_ptr.vmem [resolvable:$true] %s316
      %319 = dma.vmem_to_hbm [thread:$0]  %s317, 16, %s5, [#allocation9]
    $region33: #{tpu_custom_call.1} parent=1 // pred_fallthru
      _
    // Predicated region
    $region34: #{tpu_custom_call.1} parent=1 // pred_check
      _
    $region35: #{tpu_custom_call.1} parent=1 // pred_check_branch
      %321 = sbr.rel (0) target = $region37
    $region36: #{tpu_custom_call.1} parent=1 // pred_region
      %322 = dma.done [#allocation4], 512
    $region37: #{tpu_custom_call.1} parent=1 // pred_fallthru
      _
    // Predicated region
    $region38: #{tpu_custom_call.1} parent=1 // pred_check
      _
    $region39: #{tpu_custom_call.1} parent=1 // pred_check_branch
      %324 = sbr.rel (0) target = $region41
    $region40: #{tpu_custom_call.1} parent=1 // pred_region
      %325 = dma.done [#allocation9], 16
    $region41: #{tpu_custom_call.1} parent=1 // pred_fallthru
      _
    // Predicated region
    $region42: #{tpu_custom_call.1} parent=1 // pred_check
      _
    $region43: #{tpu_custom_call.1} parent=1 // pred_check_branch
      %327 = sbr.rel (0) target = $region45
    $region44: #{tpu_custom_call.1} parent=1 // pred_region
      %328 = dma.done [#allocation9], 16
    $region45: #{tpu_custom_call.1} parent=1 // pred_fallthru
      _
    %329 = vsyncpa [#allocation3], 1
    %330 = vsyncpa [#allocation6], 1
    %331 = vsyncpa [#allocation4], 1
    %332 = vsyncpa [#allocation9], 1

</llo_original>
